<compile_context>
chip_gen: v7x
topology: tpu7x:2x2x1
jax: 0.10.0
libtpu: 0.0.40
codegen_flags: <defaults>
</compile_context>

<pallas_src>
import math
import functools

import jax
import jax.numpy as jnp
from jax.experimental import pallas as pl
from jax.experimental.pallas import tpu as pltpu


# ----------------------------------------------------------------------------
# Sinusoidal positional-encoding table (same math as the PyTorch __init__).
# ----------------------------------------------------------------------------
def make_pe_table(d_model: int, max_len: int) -> jnp.ndarray:
    position = jnp.arange(max_len, dtype=jnp.float32)[:, None]              # [L, 1]
    div_term = jnp.exp(
        jnp.arange(0, d_model, 2, dtype=jnp.float32) * (-math.log(10000.0) / d_model)
    )                                                                        # [D/2]
    pe = jnp.zeros((max_len, 1, d_model), dtype=jnp.float32)
    pe = pe.at[:, 0, 0::2].set(jnp.sin(position * div_term))
    pe = pe.at[:, 0, 1::2].set(jnp.cos(position * div_term))
    return pe


# ----------------------------------------------------------------------------
# Kernels (operate on lane-dense [tile_s, B*D] blocks)
# ----------------------------------------------------------------------------
def _pe_add_kernel(x_ref, pe_ref, o_ref):
    o_ref[...] = x_ref[...] + pe_ref[...]


def _pe_add_dropout_kernel(x_ref, pe_ref, bits_ref, o_ref, *, threshold, scale):
    # Inverted dropout, keep-prob (1-p): keep iff bits >= p * 2^32 (uint compare,
    # no int->float convert, no sign-extension issue).
    y = x_ref[...] + pe_ref[...]
    keep = bits_ref[...] >= jnp.uint32(threshold)
    o_ref[...] = jnp.where(keep, y * jnp.float32(scale), jnp.zeros_like(y))


# ----------------------------------------------------------------------------
# Tiling helper: target ~2 MiB per input block, rounded to a multiple of 8
# sublanes (keeps double-buffered VMEM usage <= ~16-20 MiB even with 4 operands,
# safely inside v7x's 64 MiB physical / 32 MiB scoped VMEM).
# ----------------------------------------------------------------------------
def _choose_tile_s(S: int, row_bytes: int, target_block_bytes: int = 2 * 1024 * 1024) -> int:
    if S <= 8:
        return S
    t = target_block_bytes // max(row_bytes, 1)
    t = max(8, min(S, (t // 8) * 8))
    return int(t)


# ----------------------------------------------------------------------------
# Wrapper
# ----------------------------------------------------------------------------
def positional_encoding_forward(
    x: jnp.ndarray,
    pe_table: jnp.ndarray,
    *,
    dropout_p: float = 0.1,
    training: bool = False,
    rng_key=None,
    tile_s: int | None = None,
) -> jnp.ndarray:
    """x: [S, B, D].  pe_table: [max_len, 1, D] (as in the PyTorch buffer)."""
    S, B, D = x.shape
    BD = B * D

    # Lane-dense layout: collapse (B, D) -> B*D on lanes.  x reshape is free;
    # pe is broadcast over batch once in the wrapper (layout plumbing).
    x2 = x.reshape(S, BD)
    pe2 = jnp.broadcast_to(pe_table[:S], (S, B, D)).reshape(S, BD)

    itemsize = x.dtype.itemsize
    if tile_s is None:
        tile_s = _choose_tile_s(S, BD * itemsize)
    grid = (pl.cdiv(S, tile_s),)

    spec = pl.BlockSpec((tile_s, BD), lambda i: (i, 0))
    out_shape = jax.ShapeDtypeStruct((S, BD), x.dtype)
    cparams = pltpu.CompilerParams(
        dimension_semantics=("parallel",),          # independent S-tiles -> 2 TCs on v7x
        vmem_limit_bytes=32 * 1024 * 1024,          # explicit budget, fits all generations
    )

    if (not training) or dropout_p == 0.0:
        # Eval mode: dropout is the identity (deterministic).
        cost = pl.CostEstimate(
            flops=S * BD,
            transcendentals=0,
            bytes_accessed=3 * S * BD * itemsize,   # read x + read pe + write out
        )
        out2 = pl.pallas_call(
            _pe_add_kernel,
            out_shape=out_shape,
            grid=grid,
            in_specs=[spec, spec],
            out_specs=spec,
            compiler_params=cparams,
            cost_estimate=cost,
        )(x2, pe2)
        return out2.reshape(S, B, D)

    # Training mode: fused add + inverted dropout.  Random stream differs from
    # torch's RNG but the distributional semantics (keep-prob 1-p, 1/(1-p) scale)
    # match.  NOTE: pass a fresh rng_key every step or the mask repeats.
    if rng_key is None:
        rng_key = jax.random.PRNGKey(0)
    bits = jax.random.bits(rng_key, (S, BD), dtype=jnp.uint32)
    threshold = min(int(round(dropout_p * (2 ** 32))), 2 ** 32 - 1)
    scale = 1.0 / (1.0 - dropout_p)
    kernel = functools.partial(_pe_add_dropout_kernel, threshold=threshold, scale=scale)

    cost = pl.CostEstimate(
        flops=3 * S * BD,
        transcendentals=0,
        bytes_accessed=(3 * itemsize + 4) * S * BD,  # x, pe, out + uint32 bits
    )
    out2 = pl.pallas_call(
        kernel,
        out_shape=out_shape,
        grid=grid,
        in_specs=[spec, spec, spec],
        out_specs=spec,
        compiler_params=cparams,
        cost_estimate=cost,
    )(x2, pe2, bits)
    return out2.reshape(S, B, D)


# ----------------------------------------------------------------------------
# Main
# ----------------------------------------------------------------------------
if __name__ == "__main__":
    # Small shapes consistent with the module: seq=8, batch=2, d_model=32.
    seq_len, batch, d_model = 8, 2, 32
    max_len = 64

    key = jax.random.PRNGKey(0)
    kx, kd = jax.random.split(key)
    x = jax.random.normal(kx, (seq_len, batch, d_model), dtype=jnp.float32)
    pe_table = make_pe_table(d_model, max_len)

    # Eval-mode forward (dropout = identity), matching PyTorch module.eval().
    out = positional_encoding_forward(x, pe_table, dropout_p=0.1, training=False)
    out = jax.block_until_ready(out)
    ref = x + pe_table[:seq_len]
    assert out.shape == (seq_len, batch, d_model)
    assert jnp.allclose(out, ref, atol=1e-6, rtol=1e-6)

    # Training-mode (fused dropout) path: every element is either 0 (dropped)
    # or (x + pe) / (1 - p) (kept).
    p = 0.1
    out_tr = positional_encoding_forward(
        x, pe_table, dropout_p=p, training=True, rng_key=kd
    )
    out_tr = jax.block_until_ready(out_tr)
    assert out_tr.shape == (seq_len, batch, d_model)
    scaled = ref * (1.0 / (1.0 - p))
    kept_ok = jnp.abs(out_tr - scaled) < 1e-4
    dropped = jnp.abs(out_tr) < 1e-30
    assert bool(jnp.all(kept_ok | dropped))

    # Larger shape to exercise multi-step S-tiling / pipelined grid (grid=(4,)).
    S2, B2, D2 = 256, 4, 128
    x_big = jax.random.normal(jax.random.PRNGKey(1), (S2, B2, D2), dtype=jnp.float32)
    pe_big = make_pe_table(D2, S2)
    out_big = positional_encoding_forward(x_big, pe_big, training=False, tile_s=64)
    out_big = jax.block_until_ready(out_big)
    assert jnp.allclose(out_big, x_big + pe_big[:S2], atol=1e-6, rtol=1e-6)

    print("KERNEL_OK")
</pallas_src>

<mosaic_0001>
module attributes {stable_mosaic.version = 11 : i64} {
  func.func @_pe_add_kernel(%arg0: i32, %arg1: memref<8x64xf32, #tpu.memory_space<vmem>>, %arg2: memref<8x64xf32, #tpu.memory_space<vmem>>, %arg3: memref<8x64xf32, #tpu.memory_space<vmem>>) attributes {dimension_semantics = [#tpu.dimension_semantics<parallel>], iteration_bounds = array<i64: 1>, scalar_prefetch = 0 : i64, scratch_operands = 0 : i64, tpu.core_type = #tpu.core_type<tc>, window_params = [{transform_indices = @transform_0, window_bounds = array<i64: 8, 64>}, {transform_indices = @transform_1, window_bounds = array<i64: 8, 64>}, {transform_indices = @transform_2, window_bounds = array<i64: 8, 64>}]} {
    %c0 = arith.constant 0 : index
    %c0_0 = arith.constant 0 : index
    %0 = vector.load %arg1[%c0, %c0_0] : memref<8x64xf32, #tpu.memory_space<vmem>>, vector<8x64xf32>
    %c0_1 = arith.constant 0 : index
    %c0_2 = arith.constant 0 : index
    %1 = vector.load %arg2[%c0_1, %c0_2] : memref<8x64xf32, #tpu.memory_space<vmem>>, vector<8x64xf32>
    %2 = arith.addf %0, %1 : vector<8x64xf32>
    %c0_3 = arith.constant 0 : index
    %c0_4 = arith.constant 0 : index
    %3 = vector.load %arg3[%c0_3, %c0_4] : memref<8x64xf32, #tpu.memory_space<vmem>>, vector<8x64xf32>
    tpu.vector_store %arg3[%c0_3, %c0_4], %2 {strides = array<i32>} : memref<8x64xf32, #tpu.memory_space<vmem>>, vector<8x64xf32>,
    return
  }
  func.func @transform_0(%arg0: i32) -> (i32, i32) {
    %c0_i32 = arith.constant 0 : i32
    %c0_i32_0 = arith.constant 0 : i32
    return %arg0, %c0_i32 : i32, i32
  }
  func.func @transform_1(%arg0: i32) -> (i32, i32) {
    %c0_i32 = arith.constant 0 : i32
    %c0_i32_0 = arith.constant 0 : i32
    return %arg0, %c0_i32 : i32, i32
  }
  func.func @transform_2(%arg0: i32) -> (i32, i32) {
    %c0_i32 = arith.constant 0 : i32
    %c0_i32_0 = arith.constant 0 : i32
    return %arg0, %c0_i32 : i32, i32
  }
}

</mosaic_0001>

<llo_original>
// kernel: tpu_custom_call.1
$region0: #{tpu_custom_call.1}
  #allocation0 [shape = 'u32[]', space=smem, size = 0x4, offset = 0x4, fixed_abs, tag = 'smem constant byte address 0x4 - core index']
  #allocation1 [shape = 'u32[144,128]{1,0:T(1,128)}', space=vmem, size = 0x12000, scoped, tag = 'internal scratch']
  %s0 = inlined_call_operand.hbm [shape: f32[8,64], index: 0, kind: input, shape index: {}]
  %s1 = inlined_call_operand.hbm [shape: f32[8,64], index: 1, kind: input, shape index: {}]
  %s2 = inlined_call_operand.hbm [shape: f32[8,64], index: 2, kind: output, shape index: {}]
  %s3 = sld [smem:[#allocation0]]
  $region26: #{tpu_custom_call.1} parent=0
    _
  %s5 = ssub.s32 1, %s3
  %s6 = scalar_select 0, %s5, %s3
  $region1: #{tpu_custom_call.1} parent=0
    #allocation2 [shape = 'u8[4096]{0}', space=vmem, size = 0x1000, scoped, tag = 'input window, operand 0, single buffered']
    #allocation3 [shape = 's32[1]{0}', space=sflag, size = 0x4, scoped, tag = 'scoped memory for tpu_custom_call.1']
    #allocation4 [shape = 's32[1]{0}', space=sflag, size = 0x4, scoped, tag = 'scoped memory for tpu_custom_call.1']
    #allocation5 [shape = 'u8[4096]{0}', space=vmem, size = 0x1000, scoped, tag = 'input window, operand 1, single buffered']
    #allocation6 [shape = 's32[1]{0}', space=sflag, size = 0x4, scoped, tag = 'scoped memory for tpu_custom_call.1']
    #allocation7 [shape = 'u8[4096]{0}', space=vmem, size = 0x1000, scoped, tag = 'output window, operand 0, single buffered']
    %7 = vsyncpa [#allocation3], 0
    %8 = vsyncpa [#allocation6], 0
    %9 = vsyncpa [#allocation4], 0
    // Predicated region
    $region2: #{tpu_custom_call.1} parent=1 // pred_check
      _
    $region3: #{tpu_custom_call.1} parent=1 // pred_check_branch
      %11 = sbr.rel (0) target = $region5
    $region4: #{tpu_custom_call.1} parent=1 // pred_region
      %s13 = ssub.s32 128, 128
      %14 = vsyncadd [#allocation3], %s13
      %s16 = sshll.u32 [#allocation2], 4
      %s17 = int_to_ptr.vmem [resolvable:$true] %s16
      %19 = dma.hbm_to_vmem [thread:$0]  %s0, 128, %s17, [#allocation3]
    $region5: #{tpu_custom_call.1} parent=1 // pred_fallthru
      _
    // Predicated region
    $region6: #{tpu_custom_call.1} parent=1 // pred_check
      _
    $region7: #{tpu_custom_call.1} parent=1 // pred_check_branch
      %21 = sbr.rel (0) target = $region9
    $region8: #{tpu_custom_call.1} parent=1 // pred_region
      %s23 = ssub.s32 128, 128
      %24 = vsyncadd [#allocation6], %s23
      %s26 = sshll.u32 [#allocation5], 4
      %s27 = int_to_ptr.vmem [resolvable:$true] %s26
      %29 = dma.hbm_to_vmem [thread:$0]  %s1, 128, %s27, [#allocation6]
    $region9: #{tpu_custom_call.1} parent=1 // pred_fallthru
      _
    // Predicated region
    $region10: #{tpu_custom_call.1} parent=1 // pred_check
      _
    $region11: #{tpu_custom_call.1} parent=1 // pred_check_branch
      %31 = sbr.rel (0) target = $region13
    $region12: #{tpu_custom_call.1} parent=1 // pred_region
      %32 = dma.done [#allocation3], 128
    $region13: #{tpu_custom_call.1} parent=1 // pred_fallthru
      _
    // Predicated region
    $region14: #{tpu_custom_call.1} parent=1 // pred_check
      _
    $region15: #{tpu_custom_call.1} parent=1 // pred_check_branch
      %34 = sbr.rel (0) target = $region17
    $region16: #{tpu_custom_call.1} parent=1 // pred_region
      %35 = dma.done [#allocation6], 128
    $region17: #{tpu_custom_call.1} parent=1 // pred_fallthru
      _
    %v36 = vld [vmem:[#allocation2] sm:$0xff]
    %v37 = vld [vmem:[#allocation5] sm:$0xff]
    %v38 = vadd.f32 %v36, %v37
    %vm39 = vcmask 523264
    %40 = vst.msk [vmem:[#allocation7] sm:$0xff] %vm39, %v38
    // Predicated region
    $region18: #{tpu_custom_call.1} parent=1 // pred_check
      _
    $region19: #{tpu_custom_call.1} parent=1 // pred_check_branch
      %42 = sbr.rel (0) target = $region21
    $region20: #{tpu_custom_call.1} parent=1 // pred_region
      %s44 = ssub.s32 128, 128
      %45 = vsyncadd [#allocation4], %s44
      %s47 = sshll.u32 [#allocation7], 4
      %s48 = int_to_ptr.vmem [resolvable:$true] %s47
      %50 = dma.vmem_to_hbm [thread:$0]  %s48, 128, %s2, [#allocation4]
    $region21: #{tpu_custom_call.1} parent=1 // pred_fallthru
      _
    // Predicated region
    $region22: #{tpu_custom_call.1} parent=1 // pred_check
      _
    $region23: #{tpu_custom_call.1} parent=1 // pred_check_branch
      %52 = sbr.rel (0) target = $region25
    $region24: #{tpu_custom_call.1} parent=1 // pred_region
      %53 = dma.done [#allocation4], 128
    $region25: #{tpu_custom_call.1} parent=1 // pred_fallthru
      _
    %54 = vsyncpa [#allocation3], 1
    %55 = vsyncpa [#allocation6], 1
    %56 = vsyncpa [#allocation4], 1

</llo_original>
